<compile_context>
chip_gen: v5e
topology: v5e:2x2
jax: 0.10.0
libtpu: 0.0.40
codegen_flags: <defaults>
</compile_context>

<pallas_src>
import math

import jax
import jax.numpy as jnp
from jax.experimental import pallas as pl
from jax.experimental.pallas import tpu as pltpu


def _round_up(a: int, b: int) -> int:
    return (a + b - 1) // b * b


def _pick_tile(dim: int, cap: int, granule: int, min_blocks: int = 1) -> int:
    """Balanced tile: <= cap, multiple of granule, padding waste <= 1 granule/block."""
    dim_r = _round_up(max(int(dim), 1), granule)
    g = dim_r // granule
    nblocks = max(min_blocks, -(-dim_r // cap))
    nblocks = min(nblocks, g)
    return -(-g // nblocks) * granule


def _make_kernel(masking: bool, mask_value: float, out_dtype, use_scratch: bool):
    """Accumulate x @ W^T over K tiles; fuse bias + masking into the last step."""

    def kernel(*refs):
        if masking:
            if use_scratch:
                x_ref, wt_ref, b_ref, m_ref, o_ref, acc_ref = refs
            else:
                x_ref, wt_ref, b_ref, m_ref, o_ref = refs
                acc_ref = o_ref          # f32 output block is the accumulator
        else:
            m_ref = None
            if use_scratch:
                x_ref, wt_ref, b_ref, o_ref, acc_ref = refs
            else:
                x_ref, wt_ref, b_ref, o_ref = refs
                acc_ref = o_ref

        k = pl.program_id(2)

        @pl.when(k == 0)
        def _init():
            acc_ref[...] = jnp.zeros_like(acc_ref)

        acc_ref[...] += jnp.dot(
            x_ref[...], wt_ref[...], preferred_element_type=jnp.float32
        )

        @pl.when(k == pl.num_programs(2) - 1)
        def _finalize():
            out = acc_ref[...].astype(jnp.float32) + b_ref[...].astype(jnp.float32)
            if masking:
                out = jnp.where(m_ref[...] != 0, out, jnp.float32(mask_value))
            o_ref[...] = out.astype(out_dtype)

    return kernel


def prepare_linear_params(weight, bias, active_units, masking):
    """One-time prep: padded W^T, (1, Np) f32 bias row, (1, Np) i32 mask row, tiles.

    Done once per weight update (adaptation), NOT per forward call.
    """
    n_out, in_features = weight.shape
    min_blocks_n = 2 if _round_up(n_out, 128) >= 256 else 1
    tn = _pick_tile(n_out, cap=1024, granule=128, min_blocks=min_blocks_n)
    tk = _pick_tile(in_features, cap=1024, granule=128)
    Np = _round_up(n_out, tn)
    Kp = _round_up(in_features, tk)

    wt = weight.T                                    # (K, N) -> resident layout
    if (Kp, Np) != wt.shape:
        wt = jnp.pad(wt, ((0, Kp - in_features), (0, Np - n_out)))

    b = bias.astype(jnp.float32)
    if Np != n_out:
        b = jnp.pad(b, (0, Np - n_out))
    bias_row = b.reshape(1, Np)

    mask_row = None
    if masking:
        m = active_units.astype(jnp.int32)
        if Np != n_out:
            m = jnp.pad(m, (0, Np - n_out))
        mask_row = m.reshape(1, Np)

    return wt, bias_row, mask_row, tn, tk


def _linear_mask_pallas(x2d, wt, bias_row, mask_row, *, n_out, tn, tk,
                        masking, mask_value):
    M, K = x2d.shape
    Kp, Np = wt.shape

    # Common compute dtype so the in-kernel dot never sees mixed operands.
    compute_dtype = jnp.promote_types(x2d.dtype, wt.dtype)
    if x2d.dtype != compute_dtype:
        x2d = x2d.astype(compute_dtype)
    if wt.dtype != compute_dtype:          # only on dtype mismatch (not the hot path)
        wt = wt.astype(compute_dtype)
    out_dtype = compute_dtype

    tm = _pick_tile(M, cap=512, granule=8)
    Mp = _round_up(M, tm)

    xp = x2d
    if Mp != M or Kp != K:                 # skip the pad pass when already aligned
        xp = jnp.pad(x2d, ((0, Mp - M), (0, Kp - K)))

    grid = (Mp // tm, Np // tn, Kp // tk)
    use_scratch = jnp.dtype(out_dtype) != jnp.dtype(jnp.float32)
    kernel = _make_kernel(bool(masking), float(mask_value), out_dtype, use_scratch)

    in_specs = [
        pl.BlockSpec((tm, tk), lambda i, j, k: (i, k)),   # x tile
        pl.BlockSpec((tk, tn), lambda i, j, k: (k, j)),   # W^T tile
        pl.BlockSpec((1, tn), lambda i, j, k: (0, j)),    # bias row
    ]
    args = [xp, wt, bias_row]
    if masking:
        in_specs.append(pl.BlockSpec((1, tn), lambda i, j, k: (0, j)))  # mask row
        args.append(mask_row)

    scratch = [pltpu.VMEM((tm, tn), jnp.float32)] if use_scratch else []

    c_item = jnp.dtype(compute_dtype).itemsize
    o_item = jnp.dtype(out_dtype).itemsize
    n_i, n_j = Mp // tm, Np // tn
    cost = pl.CostEstimate(
        flops=2 * Mp * Np * Kp,
        transcendentals=0,
        bytes_accessed=(xp.size * n_j + wt.size * n_i) * c_item
        + Mp * Np * o_item
        + (bias_row.size * 4 + (mask_row.size * 4 if masking else 0)) * n_i,
    )

    # Raise the scoped-VMEM limit only when the double-buffered working set
    # actually needs it (stays within v7x's 64 MiB physical VMEM).
    vmem_buf_bytes = 2 * (tm * tk + tk * tn + tm * tn) * c_item
    if use_scratch:
        vmem_buf_bytes += tm * tn * 4
    vmem_limit = 48 * 1024 * 1024 if vmem_buf_bytes > 12 * 1024 * 1024 else None

    out = pl.pallas_call(
        kernel,
        out_shape=jax.ShapeDtypeStruct((Mp, Np), out_dtype),
        grid_spec=pltpu.PrefetchScalarGridSpec(
            num_scalar_prefetch=0,
            grid=grid,
            in_specs=in_specs,
            out_specs=pl.BlockSpec((tm, tn), lambda i, j, k: (i, j)),
            scratch_shapes=scratch,
        ),
        compiler_params=pltpu.CompilerParams(
            dimension_semantics=("parallel", "parallel", "arbitrary"),
            vmem_limit_bytes=vmem_limit,
        ),
        cost_estimate=cost,
    )(*args)

    if Mp != M or Np != n_out:             # skip the slice pass when already exact
        out = out[:M, :n_out]
    return out


def incremental_classifier_forward(x, weight, bias, active_units,
                                   masking=True, mask_value=-1000.0,
                                   prepared=None):
    """Pallas forward for IncrementalClassifier.

    x:            (..., in_features)
    weight:       (out_features, in_features)   (torch Linear layout)
    bias:         (out_features,)
    active_units: (out_features,) bool
    prepared:     optional cached result of prepare_linear_params (hoists the
                  per-call weight transpose/pad out of the forward path).
    """
    n_out = weight.shape[0]
    if prepared is None:
        prepared = prepare_linear_params(weight, bias, active_units, masking)
    wt, bias_row, mask_row, tn, tk = prepared

    lead = x.shape[:-1]
    x2d = x.reshape(-1, x.shape[-1])
    out = _linear_mask_pallas(x2d, wt, bias_row, mask_row, n_out=n_out,
                              tn=tn, tk=tk, masking=masking, mask_value=mask_value)
    return out.reshape(lead + (n_out,))


class IncrementalClassifier:
    """JAX/Pallas mirror of avalanche's IncrementalClassifier.

    Holds weight/bias/active_units plus cached padded kernel operands.
    forward(x) runs the fused linear+mask Pallas kernel. `adaptation` expands
    the head when new classes appear and rebuilds the cached operands.
    """

    def __init__(self, in_features, initial_out_features=2, masking=True,
                 mask_value=-1000.0, key=None, dtype=jnp.float32):
        if key is None:
            key = jax.random.PRNGKey(0)
        kw, kb = jax.random.split(key)
        bound = 1.0 / math.sqrt(in_features)
        self.in_features = in_features
        self.masking = masking
        self.mask_value = float(mask_value)
        self.weight = jax.random.uniform(
            kw, (initial_out_features, in_features),
            minval=-bound, maxval=bound, dtype=jnp.float32).astype(dtype)
        self.bias = jax.random.uniform(
            kb, (initial_out_features,),
            minval=-bound, maxval=bound, dtype=jnp.float32).astype(dtype)
        self.active_units = jnp.zeros((initial_out_features,), dtype=jnp.bool_)
        self._refresh_prepared()

    def _refresh_prepared(self):
        self._prepared = prepare_linear_params(
            self.weight, self.bias, self.active_units, self.masking)

    def adaptation(self, classes_in_this_experience):
        """Expand the classifier if unseen classes appear; activate seen units."""
        old_n = self.weight.shape[0]
        new_n = max(old_n, max(classes_in_this_experience) + 1)
        if self.masking:
            if old_n != new_n:
                au = jnp.zeros((new_n,), dtype=jnp.bool_)
                au = au.at[:old_n].set(self.active_units)
                self.active_units = au
            idx = jnp.asarray(classes_in_this_experience)
            self.active_units = self.active_units.at[idx].set(True)
        if old_n != new_n:
            # TODO(synk): new rows are zero-initialized instead of PyTorch's fresh
            # nn.Linear init for the expanded head (kernel semantics unaffected).
            self.weight = jnp.pad(self.weight, ((0, new_n - old_n), (0, 0)))
            self.bias = jnp.pad(self.bias, (0, new_n - old_n))
        self._refresh_prepared()

    def __call__(self, x, **kwargs):
        return incremental_classifier_forward(
            x, self.weight, self.bias, self.active_units,
            masking=self.masking, mask_value=self.mask_value,
            prepared=self._prepared)


if __name__ == "__main__":
    key = jax.random.PRNGKey(0)
    kx, kmod = jax.random.split(key)

    batch, in_features, init_classes = 4, 32, 2
    x = jax.random.normal(kx, (batch, in_features), dtype=jnp.float32)

    mod = IncrementalClassifier(in_features, initial_out_features=init_classes,
                                masking=True, mask_value=-1000.0, key=kmod)
    # Simulate an experience containing classes {0, 2}: expands the head to 3
    # units and marks units 0 and 2 active (unit 1 stays masked).
    mod.adaptation([0, 2])

    out = jax.block_until_ready(mod(x))

    # Pure-JAX reference.
    ref = x @ mod.weight.T + mod.bias
    ref = jnp.where(mod.active_units[None, :], ref, jnp.float32(-1000.0))

    assert out.shape == (batch, mod.weight.shape[0]), out.shape
    assert out.dtype == jnp.float32, out.dtype
    err = float(jnp.max(jnp.abs(out - ref)))
    assert err < 1e-4, f"max abs err {err}"

    print("KERNEL_OK")
</pallas_src>

<mosaic_0001>
module attributes {stable_mosaic.version = 11 : i64} {
  func.func @kernel(%arg0: i32, %arg1: i32, %arg2: i32, %arg3: memref<8x128xf32, #tpu.memory_space<vmem>>, %arg4: memref<128x128xf32, #tpu.memory_space<vmem>>, %arg5: memref<1x128xf32, #tpu.memory_space<vmem>>, %arg6: memref<1x128xi32, #tpu.memory_space<vmem>>, %arg7: memref<8x128xf32, #tpu.memory_space<vmem>>) attributes {dimension_semantics = [#tpu.dimension_semantics<parallel>, #tpu.dimension_semantics<parallel>, #tpu.dimension_semantics<arbitrary>], iteration_bounds = array<i64: 1, 1, 1>, scalar_prefetch = 0 : i64, scratch_operands = 0 : i64, tpu.core_type = #tpu.core_type<tc>, window_params = [{transform_indices = @transform_0, window_bounds = array<i64: 8, 128>}, {transform_indices = @transform_1, window_bounds = array<i64: 128, 128>}, {transform_indices = @transform_2, window_bounds = array<i64: 1, 128>}, {transform_indices = @transform_3, window_bounds = array<i64: 1, 128>}, {transform_indices = @transform_4, window_bounds = array<i64: 8, 128>}]} {
    %c0_i32 = arith.constant 0 : i32
    %0 = arith.cmpi eq, %arg2, %c0_i32 : i32
    %1 = arith.extui %0 : i1 to i32
    %c0_i32_0 = arith.constant 0 : i32
    %2 = arith.cmpi ne, %1, %c0_i32_0 : i32
    scf.if %2 {
      %cst_10 = arith.constant 0.000000e+00 : f32
      %12 = vector.broadcast %cst_10 : f32 to vector<8x128xf32>
      %c0_11 = arith.constant 0 : index
      %c0_12 = arith.constant 0 : index
      %13 = vector.load %arg7[%c0_11, %c0_12] : memref<8x128xf32, #tpu.memory_space<vmem>>, vector<8x128xf32>
      tpu.vector_store %arg7[%c0_11, %c0_12], %12 {strides = array<i32>} : memref<8x128xf32, #tpu.memory_space<vmem>>, vector<8x128xf32>,
    } else {
    }
    %c0 = arith.constant 0 : index
    %c0_1 = arith.constant 0 : index
    %3 = vector.load %arg7[%c0, %c0_1] : memref<8x128xf32, #tpu.memory_space<vmem>>, vector<8x128xf32>
    %c0_2 = arith.constant 0 : index
    %c0_3 = arith.constant 0 : index
    %4 = vector.load %arg3[%c0_2, %c0_3] : memref<8x128xf32, #tpu.memory_space<vmem>>, vector<8x128xf32>
    %c0_4 = arith.constant 0 : index
    %c0_5 = arith.constant 0 : index
    %5 = vector.load %arg4[%c0_4, %c0_5] : memref<128x128xf32, #tpu.memory_space<vmem>>, vector<128x128xf32>
    %cst = arith.constant dense<0.000000e+00> : vector<8x128xf32>
    %6 = tpu.matmul %4, %5, %cst {dimension_numbers = #tpu.dot_dimension_numbers<[1], [0], [0], [1], [0, 0, 1, 1], [], []>} : vector<8x128xf32>, vector<128x128xf32>, vector<8x128xf32> -> vector<8x128xf32>
    %7 = arith.addf %3, %6 : vector<8x128xf32>
    %c0_6 = arith.constant 0 : index
    %c0_7 = arith.constant 0 : index
    %8 = vector.load %arg7[%c0_6, %c0_7] : memref<8x128xf32, #tpu.memory_space<vmem>>, vector<8x128xf32>
    tpu.vector_store %arg7[%c0_6, %c0_7], %7 {strides = array<i32>} : memref<8x128xf32, #tpu.memory_space<vmem>>, vector<8x128xf32>,
    %c0_i32_8 = arith.constant 0 : i32
    %9 = arith.cmpi eq, %arg2, %c0_i32_8 : i32
    %10 = arith.extui %9 : i1 to i32
    %c0_i32_9 = arith.constant 0 : i32
    %11 = arith.cmpi ne, %10, %c0_i32_9 : i32
    scf.if %11 {
      %c0_10 = arith.constant 0 : index
      %c0_11 = arith.constant 0 : index
      %12 = vector.load %arg7[%c0_10, %c0_11] : memref<8x128xf32, #tpu.memory_space<vmem>>, vector<8x128xf32>
      %c0_12 = arith.constant 0 : index
      %c0_13 = arith.constant 0 : index
      %13 = vector.load %arg5[%c0_12, %c0_13] : memref<1x128xf32, #tpu.memory_space<vmem>>, vector<1x128xf32>
      %14 = vector.broadcast %13 : vector<1x128xf32> to vector<8x128xf32>
      %15 = arith.addf %12, %14 : vector<8x128xf32>
      %c0_14 = arith.constant 0 : index
      %c0_15 = arith.constant 0 : index
      %16 = vector.load %arg6[%c0_14, %c0_15] : memref<1x128xi32, #tpu.memory_space<vmem>>, vector<1x128xi32>
      %c0_i32_16 = arith.constant 0 : i32
      %17 = vector.broadcast %c0_i32_16 : i32 to vector<1x128xi32>
      %18 = arith.cmpi ne, %16, %17 : vector<1x128xi32>
      %cst_17 = arith.constant -1.000000e+03 : f32
      %19 = vector.shape_cast %18 : vector<1x128xi1> to vector<1x128xi1>
      %20 = vector.broadcast %19 : vector<1x128xi1> to vector<8x128xi1>
      %21 = vector.broadcast %cst_17 : f32 to vector<8x128xf32>
      %22 = arith.select %20, %15, %21 : vector<8x128xi1>, vector<8x128xf32>
      %c0_18 = arith.constant 0 : index
      %c0_19 = arith.constant 0 : index
      %23 = vector.load %arg7[%c0_18, %c0_19] : memref<8x128xf32, #tpu.memory_space<vmem>>, vector<8x128xf32>
      tpu.vector_store %arg7[%c0_18, %c0_19], %22 {strides = array<i32>} : memref<8x128xf32, #tpu.memory_space<vmem>>, vector<8x128xf32>,
    } else {
    }
    return
  }
  func.func @transform_0(%arg0: i32, %arg1: i32, %arg2: i32) -> (i32, i32) {
    %c0_i32 = arith.constant 0 : i32
    return %arg0, %arg2 : i32, i32
  }
  func.func @transform_1(%arg0: i32, %arg1: i32, %arg2: i32) -> (i32, i32) {
    %c0_i32 = arith.constant 0 : i32
    return %arg2, %arg1 : i32, i32
  }
  func.func @transform_2(%arg0: i32, %arg1: i32, %arg2: i32) -> (i32, i32) {
    %c0_i32 = arith.constant 0 : i32
    %c0_i32_0 = arith.constant 0 : i32
    return %c0_i32, %arg1 : i32, i32
  }
  func.func @transform_3(%arg0: i32, %arg1: i32, %arg2: i32) -> (i32, i32) {
    %c0_i32 = arith.constant 0 : i32
    %c0_i32_0 = arith.constant 0 : i32
    return %c0_i32, %arg1 : i32, i32
  }
  func.func @transform_4(%arg0: i32, %arg1: i32, %arg2: i32) -> (i32, i32) {
    %c0_i32 = arith.constant 0 : i32
    return %arg0, %arg1 : i32, i32
  }
}

</mosaic_0001>

<llo_original>
// kernel: tpu_custom_call.1
$region0: #{tpu_custom_call.1}
  #allocation0 [shape = 'u32[]', space=smem, size = 0x4, offset = 0x4, fixed_abs, tag = 'smem constant byte address 0x4 - core index']
  #allocation1 [shape = 'u32[72,128]{1,0:T(1,128)}', space=vmem, size = 0x9000, scoped, tag = 'internal scratch']
  %s0 = inlined_call_operand.hbm [shape: f32[8,128], index: 0, kind: input, shape index: {}]
  %s1 = inlined_call_operand.hbm [shape: f32[128,128], index: 1, kind: input, shape index: {}]
  %s2 = inlined_call_operand.vmem [shape: f32[1,128], index: 2, kind: input, shape index: {}]
  %s3 = inlined_call_operand.vmem [shape: s32[1,128], index: 3, kind: input, shape index: {}]
  %s4 = inlined_call_operand.hbm [shape: f32[8,128], index: 4, kind: output, shape index: {}]
  %s5 = sld [smem:[#allocation0]]
  $region42: #{tpu_custom_call.1} parent=0
    _
  %s7 = ssub.s32 1, %s5
  %s8 = scalar_select 0, %s7, %s5
  $region1: #{tpu_custom_call.1} parent=0
    #allocation2 [shape = 'u8[4096]{0}', space=vmem, size = 0x1000, scoped, tag = 'input window, operand 0, single buffered']
    #allocation3 [shape = 's32[1]{0}', space=sflag, size = 0x4, scoped, tag = 'scoped memory for tpu_custom_call.1']
    #allocation4 [shape = 's32[1]{0}', space=sflag, size = 0x4, scoped, tag = 'scoped memory for tpu_custom_call.1']
    #allocation5 [shape = 'u8[65536]{0}', space=vmem, size = 0x10000, scoped, tag = 'input window, operand 1, single buffered']
    #allocation6 [shape = 's32[1]{0}', space=sflag, size = 0x4, scoped, tag = 'scoped memory for tpu_custom_call.1']
    #allocation7 [shape = 'u8[4096]{0}', space=vmem, size = 0x1000, scoped, tag = 'output window, operand 0, single buffered']
    %9 = vsyncpa [#allocation3], 0
    %10 = vsyncpa [#allocation6], 0
    %11 = vsyncpa [#allocation4], 0
    // Predicated region
    $region2: #{tpu_custom_call.1} parent=1 // pred_check
      _
    $region3: #{tpu_custom_call.1} parent=1 // pred_check_branch
      %13 = sbr.rel (0) target = $region5
    $region4: #{tpu_custom_call.1} parent=1 // pred_region
      %15 = vsyncadd [#allocation3], 0
      %s17 = sshll.u32 %s0, 4
      %s18 = int_to_ptr.hbm [resolvable:$true] %s17
      %s19 = sshll.u32 [#allocation2], 4
      %s20 = int_to_ptr.vmem [resolvable:$true] %s19
      %22 = dma.hbm_to_vmem [thread:$0]  %s18, 128, %s20, [#allocation3]
    $region5: #{tpu_custom_call.1} parent=1 // pred_fallthru
      _
    // Predicated region
    $region6: #{tpu_custom_call.1} parent=1 // pred_check
      _
    $region7: #{tpu_custom_call.1} parent=1 // pred_check_branch
      %24 = sbr.rel (0) target = $region9
    $region8: #{tpu_custom_call.1} parent=1 // pred_region
      %26 = vsyncadd [#allocation6], 0
      %s27 = sshll.u32 %s1, 4
      %s28 = int_to_ptr.hbm [resolvable:$true] %s27
      %s29 = sshll.u32 [#allocation5], 4
      %s30 = int_to_ptr.vmem [resolvable:$true] %s29
      %35 = dma.hbm_to_vmem [thread:$0]  %s28, 2048, %s30, [#allocation6], 128, 128, 8
    $region9: #{tpu_custom_call.1} parent=1 // pred_fallthru
      _
    // Predicated region
    $region10: #{tpu_custom_call.1} parent=1 // pred_check
      _
    $region11: #{tpu_custom_call.1} parent=1 // pred_check_branch
      %37 = sbr.rel (0) target = $region13
    $region12: #{tpu_custom_call.1} parent=1 // pred_region
      _
    $region13: #{tpu_custom_call.1} parent=1 // pred_fallthru
      _
    // Predicated region
    $region14: #{tpu_custom_call.1} parent=1 // pred_check
      _
    $region15: #{tpu_custom_call.1} parent=1 // pred_check_branch
      %39 = sbr.rel (0) target = $region17
    $region16: #{tpu_custom_call.1} parent=1 // pred_region
      _
    $region17: #{tpu_custom_call.1} parent=1 // pred_fallthru
      _
    // Predicated region
    $region18: #{tpu_custom_call.1} parent=1 // pred_check
      _
    $region19: #{tpu_custom_call.1} parent=1 // pred_check_branch
      %41 = sbr.rel (0) target = $region21
    $region20: #{tpu_custom_call.1} parent=1 // pred_region
      %43 = dma.done [#allocation3], 128
    $region21: #{tpu_custom_call.1} parent=1 // pred_fallthru
      _
    // Predicated region
    $region22: #{tpu_custom_call.1} parent=1 // pred_check
      _
    $region23: #{tpu_custom_call.1} parent=1 // pred_check_branch
      %45 = sbr.rel (0) target = $region25
    $region24: #{tpu_custom_call.1} parent=1 // pred_region
      %47 = dma.done [#allocation6], 2048
    $region25: #{tpu_custom_call.1} parent=1 // pred_fallthru
      _
    %p48 = scmp.eq.s32.totalorder 0, 0
    // Predicated region
    $region26: #{tpu_custom_call.1} parent=1 // pred_check
      %p49 = pneg %p48
    $region27: #{tpu_custom_call.1} parent=1 // pred_check_branch
      %51 = sbr.rel (%p49) target = $region29
    $region28: #{tpu_custom_call.1} parent=1 // pred_region
      %52 = vst [vmem:[#allocation7] sm:$0xff] 0.0
    $region29: #{tpu_custom_call.1} parent=1 // pred_fallthru
      _
    %v53 = vld [vmem:[#allocation7] sm:$0xff]
    %v54 = vld [vmem:[#allocation2] sm:$0xff]
    %v55 = vld [vmem:[#allocation5] sm:$0xff]
    %v56 = vld [vmem:[#allocation5 + $0x8] sm:$0xff]
    %v57 = vld [vmem:[#allocation5 + $0x10] sm:$0xff]
    %v58 = vld [vmem:[#allocation5 + $0x18] sm:$0xff]
    %v59 = vld [vmem:[#allocation5 + $0x20] sm:$0xff]
    %v60 = vld [vmem:[#allocation5 + $0x28] sm:$0xff]
    %v61 = vld [vmem:[#allocation5 + $0x30] sm:$0xff]
    %v62 = vld [vmem:[#allocation5 + $0x38] sm:$0xff]
    %v63 = vld [vmem:[#allocation5 + $0x40] sm:$0xff]
    %v64 = vld [vmem:[#allocation5 + $0x48] sm:$0xff]
    %v65 = vld [vmem:[#allocation5 + $0x50] sm:$0xff]
    %v66 = vld [vmem:[#allocation5 + $0x58] sm:$0xff]
    %v67 = vld [vmem:[#allocation5 + $0x60] sm:$0xff]
    %v68 = vld [vmem:[#allocation5 + $0x68] sm:$0xff]
    %v69 = vld [vmem:[#allocation5 + $0x70] sm:$0xff]
    %v70 = vld [vmem:[#allocation5 + $0x78] sm:$0xff]
    %71 = vmatpush.msra.mxu0 %v70
    %72 = vmatpush.msra.mxu0 %v69
    %73 = vmatpush.msra.mxu0 %v68
    %74 = vmatpush.msra.mxu0 %v67
    %75 = vmatpush.msra.mxu0 %v66
    %76 = vmatpush.msra.mxu0 %v65
    %77 = vmatpush.msra.mxu0 %v64
    %78 = vmatpush.msra.mxu0 %v63
    %79 = vmatpush.msra.mxu0 %v62
    %80 = vmatpush.msra.mxu0 %v61
    %81 = vmatpush.msra.mxu0 %v60
    %82 = vmatpush.msra.mxu0 %v59
    %83 = vmatpush.msra.mxu0 %v58
    %84 = vmatpush.msra.mxu0 %v57
    %85 = vmatpush.msra.mxu0 %v56
    %86 = vmatpush.msra.mxu0 %v55
    %87 = vmatmul.f32.gmra.mxu0 %v54
    %v88 = vpop.f32.mrf.mxu0
    %v89 = vadd.f32 0.0, %v88
    %90 = vdwg.mxu0
    %v91 = vadd.f32 %v53, %v89
    %92 = vst [vmem:[#allocation7] sm:$0xff] %v91
    // Predicated region
    $region30: #{tpu_custom_call.1} parent=1 // pred_check
      %p93 = pneg %p48
    $region31: #{tpu_custom_call.1} parent=1 // pred_check_branch
      %95 = sbr.rel (%p93) target = $region33
    $region32: #{tpu_custom_call.1} parent=1 // pred_region
      %v96 = vld [vmem:[#allocation7] sm:$0xff]
      %v97 = vld [vmem:[%s2] sm:$0x1]
      %v99 = vperm.slane %v97, 0
      %v101 = vadd.f32 %v96, %v99
      %v102 = vld [vmem:[%s3] sm:$0x1]
      %vm103 = vcmp.ne.s32.totalorder %v102, 0
      %v104 = vsel %vm103, 1, 0
      %v105 = vperm.slane %v104, 0
      %vm106 = vcmp.eq.s32.totalorder %v105, 1
      %v107 = vsel %vm106, %v101, -1000.0
      %108 = vst [vmem:[#allocation7] sm:$0xff] %v107
    $region33: #{tpu_custom_call.1} parent=1 // pred_fallthru
      _
    // Predicated region
    $region34: #{tpu_custom_call.1} parent=1 // pred_check
      _
    $region35: #{tpu_custom_call.1} parent=1 // pred_check_branch
      %110 = sbr.rel (0) target = $region37
    $region36: #{tpu_custom_call.1} parent=1 // pred_region
      %112 = vsyncadd [#allocation4], 0
      %s114 = sshll.u32 [#allocation7], 4
      %s115 = int_to_ptr.vmem [resolvable:$true] %s114
      %s116 = sshll.u32 %s4, 4
      %s117 = int_to_ptr.hbm [resolvable:$true] %s116
      %119 = dma.vmem_to_hbm [thread:$0]  %s115, 128, %s117, [#allocation4]
    $region37: #{tpu_custom_call.1} parent=1 // pred_fallthru
      _
    // Predicated region
    $region38: #{tpu_custom_call.1} parent=1 // pred_check
      _
    $region39: #{tpu_custom_call.1} parent=1 // pred_check_branch
      %121 = sbr.rel (0) target = $region41
    $region40: #{tpu_custom_call.1} parent=1 // pred_region
      %123 = dma.done [#allocation4], 128
    $region41: #{tpu_custom_call.1} parent=1 // pred_fallthru
      _
    %124 = vsyncpa [#allocation3], 1
    %125 = vsyncpa [#allocation6], 1
    %126 = vsyncpa [#allocation4], 1

</llo_original>
